<compile_context>
chip_gen: v6e
topology: v6e:2x2x1
jax: 0.10.0
libtpu: 0.0.40
codegen_flags: <defaults>
</compile_context>

<pallas_src>
import functools

import jax
import jax.numpy as jnp
import numpy as np
from jax.experimental import pallas as pl
from jax.experimental.pallas import tpu as pltpu


def _round_up(v, m):
    return (v + m - 1) // m * m


def _cnn_kernel(x_ref, w_ref, b_ref, mask_ref, fcw_ref, fcb_ref, out_ref,
                *, max_k, tap_stride):
    """One batch block: fused conv (all banks) + ReLU + max-pool + FC + log_softmax."""
    x = x_ref[...]                                    # (tb, Lp, D) bf16
    tb, lp, d = x.shape
    rows = tb * lp

    # Single MXU matmul over the whole block: (tb*Lp, D) @ (D, max_k*ts) -> f32.
    xf = x.reshape(rows, d)
    y = jnp.dot(xf, w_ref[...], preferred_element_type=jnp.float32)   # (rows, P)

    # Rebuild per-position window sums.  Tap block f lives in the 32-aligned
    # lane range [f*ts, (f+1)*ts); slice it first, then roll ONLY that slice
    # along the sublane (time) axis (row t <- row t+f).  Banks without tap f
    # have zero weight columns there, so the fused add is bank-agnostic.
    s = y[:, 0:tap_stride]
    for f in range(1, max_k):
        blk = y[:, f * tap_stride:(f + 1) * tap_stride]
        s = s + pltpu.roll(blk, rows - f, 0)

    # Bias + ReLU once on the fused slab.
    s = jnp.maximum(s + b_ref[...], 0.0)              # (rows, ts) f32

    # Max-pool over valid time positions.  NOTE (correctness invariant): the
    # sublane roll wraps across sentence / block boundaries, but every
    # contaminated position t satisfies t >= L-k+1 for its bank and mask_ref
    # carries -1e30 exactly there, so wrapped values can never win the max
    # (valid positions are >= 0 after ReLU).
    s = s.reshape(tb, lp, tap_stride) + mask_ref[...][None]
    pooled = s.max(axis=1)                            # (tb, ts) f32

    # FC + log_softmax on a lane-dense, 128-padded logit tile.  Padded logit
    # columns carry a -1e30 bias so they vanish under the softmax reduction.
    z = jnp.dot(pooled, fcw_ref[...], preferred_element_type=jnp.float32) + fcb_ref[...]
    m = jnp.max(z, axis=-1, keepdims=True)
    lse = jnp.log(jnp.sum(jnp.exp(z - m), axis=-1, keepdims=True)) + m
    out_ref[...] = (z - lse).astype(out_ref.dtype)


def cnn_forward(x_emb, conv_params, fc_w, fc_b, *, filters, filter_num, label_size):
    """x_emb: (B, L, D) (ideally bf16); conv_params: list of (w (K, D, N), b (1, N))."""
    B, L, D = x_emb.shape
    max_k = max(filters)
    assert L >= max_k, "max_sent_len must be >= largest filter width"
    n_sum = sum(filter_num)
    tap_stride = _round_up(n_sum, 32)          # 32-lane-aligned tap blocks
    P = max_k * tap_stride                     # fused conv weight width
    C_PAD = _round_up(label_size, 128)         # lane-dense logits / output tile
    L_pad = _round_up(L, 8)                    # sublane-aligned time axis

    # ---- host-side packing into lane-aligned, zero/neg-padded operands ----
    w_big = np.zeros((D, P), np.float32)
    b_all = np.zeros((1, tap_stride), np.float32)
    mask = np.zeros((L_pad, tap_stride), np.float32)
    fcw_pad = np.zeros((tap_stride, C_PAD), np.float32)
    fcb_pad = np.full((1, C_PAD), -1e30, np.float32)
    off = 0
    for (w, b), k, n in zip(conv_params, filters, filter_num):
        w_np = np.asarray(w, np.float32)
        b_np = np.asarray(b, np.float32)
        for f in range(k):
            w_big[:, f * tap_stride + off: f * tap_stride + off + n] = w_np[f]
        b_all[0, off:off + n] = b_np[0]
        mask[L - k + 1:, off:off + n] = -1e30  # invalid / wrapped conv positions
        off += n
    fcw_pad[:n_sum, :label_size] = np.asarray(fc_w, np.float32)
    fcb_pad[0, :label_size] = np.asarray(fc_b, np.float32).reshape(-1)

    w_bf = jnp.asarray(w_big, dtype=jnp.bfloat16)
    b_all = jnp.asarray(b_all)
    mask = jnp.asarray(mask)
    fcw_pad = jnp.asarray(fcw_pad)
    fcb_pad = jnp.asarray(fcb_pad)

    # bf16 activations streamed straight from the (bf16) embedding gather; only
    # cast if the caller handed us f32 (avoids an extra HBM round-trip).
    if x_emb.dtype != jnp.bfloat16:
        x_emb = x_emb.astype(jnp.bfloat16)

    # ---- batch tile: multiple of 8, sized from this chip's VMEM capacity,
    # capped so large batches get >= 4 grid steps (pipelining + v7x 2-TC) ----
    try:
        vmem_cap = int(pltpu.get_tpu_info().vmem_capacity_bytes)
    except Exception:
        vmem_cap = 64 << 20                    # conservative (v7x-sized) fallback
    per_row = (L_pad * (2 * D * 2              # x block, double-buffered bf16
                        + P * 4                # conv result y (f32)
                        + 3 * tap_stride * 4)  # s + rolled tap slices (f32)
               + (tap_stride + 4 * C_PAD) * 4)  # pooled / logits / out buffers
    fixed = (D * P + L_pad * tap_stride + tap_stride * C_PAD
             + tap_stride + C_PAD) * 8 + (2 << 20)
    budget = vmem_cap // 2
    tb_vmem = max(8, (max(budget - fixed, 8 * per_row) // per_row) // 8 * 8)
    tb_steps = max(8, _round_up((B + 3) // 4, 8))
    tb = int(min(tb_vmem, tb_steps, 512))
    B_pad = _round_up(B, tb)
    if (B_pad - B) or (L_pad - L):
        x_emb = jnp.pad(x_emb, ((0, B_pad - B), (0, L_pad - L), (0, 0)))
    grid = (B_pad // tb,)
    vmem_limit = int(min(vmem_cap * 3 // 4, 96 << 20))

    flops = 2 * B_pad * L_pad * D * P + 2 * B_pad * tap_stride * C_PAD
    bytes_accessed = (B_pad * L_pad * D * 2 + int(w_bf.size) * 2 + B_pad * C_PAD * 4
                      + (int(b_all.size) + int(mask.size)
                         + int(fcw_pad.size) + int(fcb_pad.size)) * 4)

    kernel = functools.partial(_cnn_kernel, max_k=max_k, tap_stride=tap_stride)
    out = pl.pallas_call(
        kernel,
        out_shape=jax.ShapeDtypeStruct((B_pad, C_PAD), jnp.float32),
        grid=grid,
        in_specs=[
            pl.BlockSpec((tb, L_pad, D), lambda i: (i, 0, 0)),       # x (streamed)
            pl.BlockSpec((D, P), lambda i: (0, 0)),                  # fused conv weight
            pl.BlockSpec((1, tap_stride), lambda i: (0, 0)),         # fused conv bias
            pl.BlockSpec((L_pad, tap_stride), lambda i: (0, 0)),     # pool validity mask
            pl.BlockSpec((tap_stride, C_PAD), lambda i: (0, 0)),     # fc weight (padded)
            pl.BlockSpec((1, C_PAD), lambda i: (0, 0)),              # fc bias (padded)
        ],
        out_specs=pl.BlockSpec((tb, C_PAD), lambda i: (i, 0)),       # lane-dense logits
        compiler_params=pltpu.CompilerParams(
            dimension_semantics=("parallel",),
            vmem_limit_bytes=vmem_limit),
        cost_estimate=pl.CostEstimate(flops=flops,
                                      transcendentals=B_pad * C_PAD,
                                      bytes_accessed=bytes_accessed),
    )(x_emb, w_bf, b_all, mask, fcw_pad, fcb_pad)
    return out[:B, :label_size]


def _reference_forward(x_emb, conv_params, fc_w, fc_b, filters):
    """Pure-jnp reference of the same math (bf16 matmul operands, f32 accum)."""
    B, L, D = x_emb.shape
    xb = x_emb.astype(jnp.bfloat16)
    pooled = []
    for (w, b), k in zip(conv_params, filters):
        T = L - k + 1
        s = jnp.zeros((B, T, w.shape[2]), jnp.float32)
        for f in range(k):
            s = s + jnp.einsum("btd,dn->btn", xb[:, f:f + T, :],
                               w[f].astype(jnp.bfloat16),
                               preferred_element_type=jnp.float32)
        s = jax.nn.relu(s + b[None, :, :])
        pooled.append(s.max(axis=1))
    feat = jnp.concatenate(pooled, axis=1)
    z = feat @ fc_w + fc_b
    return jax.nn.log_softmax(z, axis=-1)


if __name__ == "__main__":
    # Small deterministic config (CNN3 args equivalents).
    B = 2                   # batch_size
    L = 16                  # max sentence length
    D = 32                  # args.embed_dim
    VOCAB = 50              # args.num_features
    FILTERS = (3, 4, 5)     # args.kernel_sizes
    FILTER_NUM = (8, 8, 8)  # args.kernel_num per bank
    C = 5                   # args.class_num

    key = jax.random.PRNGKey(0)
    k_inp, k_emb, k_fc_w, k_fc_b, *k_convs = jax.random.split(key, 4 + 2 * len(FILTERS))

    # Token ids; nn.Embedding(num_features + 1, embed_dim).  Table kept in bf16
    # so the gather feeds the kernel directly (no wrapper-level cast pass).
    inp = jax.random.randint(k_inp, (B, L), 0, VOCAB + 1, dtype=jnp.int32)
    emb_table = (0.1 * jax.random.normal(k_emb, (VOCAB + 1, D), jnp.float32)
                 ).astype(jnp.bfloat16)

    # Conv params: w (K, D, N) maps to torch Conv2d weight (N,1,K,D) via
    # w[k, d, n] = w_torch[n, 0, k, d]; bias (1, N).
    conv_params = []
    for i, (K, N) in enumerate(zip(FILTERS, FILTER_NUM)):
        kw, kb = k_convs[2 * i], k_convs[2 * i + 1]
        w = 0.1 * jax.random.normal(kw, (K, D, N), jnp.float32)
        b = 0.1 * jax.random.normal(kb, (1, N), jnp.float32)
        conv_params.append((w, b))

    # fc_w is torch Linear weight transposed: (sum(N), C); fc_b (1, C).
    fc_w = 0.1 * jax.random.normal(k_fc_w, (sum(FILTER_NUM), C), jnp.float32)
    fc_b = 0.1 * jax.random.normal(k_fc_b, (1, C), jnp.float32)

    # Embedding lookup is plain-JAX gather glue outside the kernel.
    x_emb = emb_table[inp]                            # (B, L, D) bf16
    # TODO(synk): nn.Dropout is identity at inference and the args.static /
    # F.Variable branch is not modeled.

    out = cnn_forward(x_emb, conv_params, fc_w, fc_b,
                      filters=FILTERS, filter_num=FILTER_NUM, label_size=C)
    out = jax.block_until_ready(out)

    ref = _reference_forward(x_emb, conv_params, fc_w, fc_b, FILTERS)
    assert out.shape == (B, C)
    assert jnp.allclose(out, ref, atol=2e-4, rtol=2e-4), "mismatch vs jnp reference"

    print("KERNEL_OK")
</pallas_src>

<mosaic_0001>
module attributes {stable_mosaic.version = 11 : i64} {
  func.func @_cnn_kernel(%arg0: i32, %arg1: memref<8x16x32xbf16, #tpu.memory_space<vmem>>, %arg2: memref<32x160xbf16, #tpu.memory_space<vmem>>, %arg3: memref<1x32xf32, #tpu.memory_space<vmem>>, %arg4: memref<16x32xf32, #tpu.memory_space<vmem>>, %arg5: memref<32x128xf32, #tpu.memory_space<vmem>>, %arg6: memref<1x128xf32, #tpu.memory_space<vmem>>, %arg7: memref<8x128xf32, #tpu.memory_space<vmem>>) attributes {dimension_semantics = [#tpu.dimension_semantics<parallel>], iteration_bounds = array<i64: 1>, scalar_prefetch = 0 : i64, scratch_operands = 0 : i64, tpu.core_type = #tpu.core_type<tc>, window_params = [{transform_indices = @transform_0, window_bounds = array<i64: 8, 16, 32>}, {pipeline_mode = #tpu.pipeline_mode<synchronous>, transform_indices = @transform_1, window_bounds = array<i64: 32, 160>}, {pipeline_mode = #tpu.pipeline_mode<synchronous>, transform_indices = @transform_2, window_bounds = array<i64: 1, 32>}, {pipeline_mode = #tpu.pipeline_mode<synchronous>, transform_indices = @transform_3, window_bounds = array<i64: 16, 32>}, {pipeline_mode = #tpu.pipeline_mode<synchronous>, transform_indices = @transform_4, window_bounds = array<i64: 32, 128>}, {pipeline_mode = #tpu.pipeline_mode<synchronous>, transform_indices = @transform_5, window_bounds = array<i64: 1, 128>}, {transform_indices = @transform_6, window_bounds = array<i64: 8, 128>}]} {
    %c0 = arith.constant 0 : index
    %c0_0 = arith.constant 0 : index
    %c0_1 = arith.constant 0 : index
    %0 = vector.load %arg1[%c0, %c0_0, %c0_1] : memref<8x16x32xbf16, #tpu.memory_space<vmem>>, vector<8x16x32xbf16>
    %1 = vector.shape_cast %0 : vector<8x16x32xbf16> to vector<128x32xbf16>
    %c0_2 = arith.constant 0 : index
    %c0_3 = arith.constant 0 : index
    %2 = vector.load %arg2[%c0_2, %c0_3] : memref<32x160xbf16, #tpu.memory_space<vmem>>, vector<32x160xbf16>
    %cst = arith.constant dense<0.000000e+00> : vector<128x160xf32>
    %3 = tpu.matmul %1, %2, %cst {dimension_numbers = #tpu.dot_dimension_numbers<[1], [0], [0], [1], [0, 0, 1, 1], [], []>} : vector<128x32xbf16>, vector<32x160xbf16>, vector<128x160xf32> -> vector<128x160xf32>
    %4 = vector.extract_strided_slice %3 {offsets = [0, 0], sizes = [128, 32], strides = [1, 1]} : vector<128x160xf32> to vector<128x32xf32>
    %5 = vector.extract_strided_slice %3 {offsets = [0, 32], sizes = [128, 32], strides = [1, 1]} : vector<128x160xf32> to vector<128x32xf32>
    %c127_i32 = arith.constant 127 : i32
    %6 = tpu.dynamic_rotate %5 by %c127_i32 dim 0 : vector<128x32xf32>, i32 -> vector<128x32xf32>
    %7 = arith.addf %4, %6 : vector<128x32xf32>
    %8 = vector.extract_strided_slice %3 {offsets = [0, 64], sizes = [128, 32], strides = [1, 1]} : vector<128x160xf32> to vector<128x32xf32>
    %c126_i32 = arith.constant 126 : i32
    %9 = tpu.dynamic_rotate %8 by %c126_i32 dim 0 : vector<128x32xf32>, i32 -> vector<128x32xf32>
    %10 = arith.addf %7, %9 : vector<128x32xf32>
    %11 = vector.extract_strided_slice %3 {offsets = [0, 96], sizes = [128, 32], strides = [1, 1]} : vector<128x160xf32> to vector<128x32xf32>
    %c125_i32 = arith.constant 125 : i32
    %12 = tpu.dynamic_rotate %11 by %c125_i32 dim 0 : vector<128x32xf32>, i32 -> vector<128x32xf32>
    %13 = arith.addf %10, %12 : vector<128x32xf32>
    %14 = vector.extract_strided_slice %3 {offsets = [0, 128], sizes = [128, 32], strides = [1, 1]} : vector<128x160xf32> to vector<128x32xf32>
    %c124_i32 = arith.constant 124 : i32
    %15 = tpu.dynamic_rotate %14 by %c124_i32 dim 0 : vector<128x32xf32>, i32 -> vector<128x32xf32>
    %16 = arith.addf %13, %15 : vector<128x32xf32>
    %c0_4 = arith.constant 0 : index
    %c0_5 = arith.constant 0 : index
    %17 = vector.load %arg3[%c0_4, %c0_5] : memref<1x32xf32, #tpu.memory_space<vmem>>, vector<1x32xf32>
    %18 = vector.broadcast %17 : vector<1x32xf32> to vector<128x32xf32>
    %19 = arith.addf %16, %18 : vector<128x32xf32>
    %cst_6 = arith.constant 0.000000e+00 : f32
    %20 = vector.broadcast %cst_6 : f32 to vector<128x32xf32>
    %21 = arith.maximumf %19, %20 : vector<128x32xf32>
    %22 = vector.shape_cast %21 : vector<128x32xf32> to vector<8x16x32xf32>
    %c0_7 = arith.constant 0 : index
    %c0_8 = arith.constant 0 : index
    %23 = vector.load %arg4[%c0_7, %c0_8] : memref<16x32xf32, #tpu.memory_space<vmem>>, vector<16x32xf32>
    %24 = vector.shape_cast %23 : vector<16x32xf32> to vector<1x16x32xf32>
    %25 = vector.broadcast %24 : vector<1x16x32xf32> to vector<8x16x32xf32>
    %26 = arith.addf %22, %25 : vector<8x16x32xf32>
    %cst_9 = arith.constant dense<0xFF800000> : vector<8x32xf32>
    %27 = vector.multi_reduction <maximumf>, %26, %cst_9 [1] : vector<8x16x32xf32> to vector<8x32xf32>
    %c0_10 = arith.constant 0 : index
    %c0_11 = arith.constant 0 : index
    %28 = vector.load %arg5[%c0_10, %c0_11] : memref<32x128xf32, #tpu.memory_space<vmem>>, vector<32x128xf32>
    %cst_12 = arith.constant dense<0.000000e+00> : vector<8x128xf32>
    %29 = tpu.matmul %27, %28, %cst_12 {dimension_numbers = #tpu.dot_dimension_numbers<[1], [0], [0], [1], [0, 0, 1, 1], [], []>} : vector<8x32xf32>, vector<32x128xf32>, vector<8x128xf32> -> vector<8x128xf32>
    %c0_13 = arith.constant 0 : index
    %c0_14 = arith.constant 0 : index
    %30 = vector.load %arg6[%c0_13, %c0_14] : memref<1x128xf32, #tpu.memory_space<vmem>>, vector<1x128xf32>
    %31 = vector.broadcast %30 : vector<1x128xf32> to vector<8x128xf32>
    %32 = arith.addf %29, %31 : vector<8x128xf32>
    %cst_15 = arith.constant dense<0xFF800000> : vector<8xf32>
    %33 = vector.multi_reduction <maximumf>, %32, %cst_15 [1] : vector<8x128xf32> to vector<8xf32>
    %34 = vector.shape_cast %33 : vector<8xf32> to vector<8x1xf32>
    %35 = vector.broadcast %34 : vector<8x1xf32> to vector<8x128xf32>
    %36 = arith.subf %32, %35 : vector<8x128xf32>
    %37 = math.exp %36 : vector<8x128xf32>
    %cst_16 = arith.constant dense<0.000000e+00> : vector<8xf32>
    %38 = vector.multi_reduction <add>, %37, %cst_16 [1] : vector<8x128xf32> to vector<8xf32>
    %39 = vector.shape_cast %38 : vector<8xf32> to vector<8x1xf32>
    %40 = math.log %39 : vector<8x1xf32>
    %41 = arith.addf %40, %34 : vector<8x1xf32>
    %42 = vector.broadcast %41 : vector<8x1xf32> to vector<8x128xf32>
    %43 = arith.subf %32, %42 : vector<8x128xf32>
    %c0_17 = arith.constant 0 : index
    %c0_18 = arith.constant 0 : index
    %44 = vector.load %arg7[%c0_17, %c0_18] : memref<8x128xf32, #tpu.memory_space<vmem>>, vector<8x128xf32>
    tpu.vector_store %arg7[%c0_17, %c0_18], %43 {strides = array<i32>} : memref<8x128xf32, #tpu.memory_space<vmem>>, vector<8x128xf32>,
    return
  }
  func.func @transform_0(%arg0: i32) -> (i32, i32, i32) {
    %c0_i32 = arith.constant 0 : i32
    %c0_i32_0 = arith.constant 0 : i32
    %c0_i32_1 = arith.constant 0 : i32
    return %arg0, %c0_i32, %c0_i32_0 : i32, i32, i32
  }
  func.func @transform_1(%arg0: i32) -> (i32, i32) {
    %c0_i32 = arith.constant 0 : i32
    %c0_i32_0 = arith.constant 0 : i32
    %c0_i32_1 = arith.constant 0 : i32
    return %c0_i32, %c0_i32_0 : i32, i32
  }
  func.func @transform_2(%arg0: i32) -> (i32, i32) {
    %c0_i32 = arith.constant 0 : i32
    %c0_i32_0 = arith.constant 0 : i32
    %c0_i32_1 = arith.constant 0 : i32
    return %c0_i32, %c0_i32_0 : i32, i32
  }
  func.func @transform_3(%arg0: i32) -> (i32, i32) {
    %c0_i32 = arith.constant 0 : i32
    %c0_i32_0 = arith.constant 0 : i32
    %c0_i32_1 = arith.constant 0 : i32
    return %c0_i32, %c0_i32_0 : i32, i32
  }
  func.func @transform_4(%arg0: i32) -> (i32, i32) {
    %c0_i32 = arith.constant 0 : i32
    %c0_i32_0 = arith.constant 0 : i32
    %c0_i32_1 = arith.constant 0 : i32
    return %c0_i32, %c0_i32_0 : i32, i32
  }
  func.func @transform_5(%arg0: i32) -> (i32, i32) {
    %c0_i32 = arith.constant 0 : i32
    %c0_i32_0 = arith.constant 0 : i32
    %c0_i32_1 = arith.constant 0 : i32
    return %c0_i32, %c0_i32_0 : i32, i32
  }
  func.func @transform_6(%arg0: i32) -> (i32, i32) {
    %c0_i32 = arith.constant 0 : i32
    %c0_i32_0 = arith.constant 0 : i32
    return %arg0, %c0_i32 : i32, i32
  }
}

</mosaic_0001>

<llo_original>
// kernel: tpu_custom_call.1
$region0: #{tpu_custom_call.1}
  #allocation0 [shape = 'u32[]', space=smem, size = 0x4, offset = 0x4, fixed_abs, tag = 'smem constant byte address 0x4 - core index']
  #allocation1 [shape = 'u32[144,128]{1,0:T(1,128)}', space=vmem, size = 0x12000, scoped, tag = 'internal scratch']
  %s0 = inlined_call_operand.hbm [shape: bf16[8,16,32], index: 0, kind: input, shape index: {}]
  %s1 = inlined_call_operand.hbm [shape: bf16[32,160], index: 1, kind: input, shape index: {}]
  %s2 = inlined_call_operand.vmem [shape: f32[1,32], index: 2, kind: input, shape index: {}]
  %s3 = inlined_call_operand.hbm [shape: f32[16,32], index: 3, kind: input, shape index: {}]
  %s4 = inlined_call_operand.hbm [shape: f32[32,128], index: 4, kind: input, shape index: {}]
  %s5 = inlined_call_operand.vmem [shape: f32[1,128], index: 5, kind: input, shape index: {}]
  %s6 = inlined_call_operand.hbm [shape: f32[8,128], index: 6, kind: output, shape index: {}]
  %s7 = sld [smem:[#allocation0]]
  $region50: #{tpu_custom_call.1} parent=0
    _
  %s9 = ssub.s32 1, %s7
  %s10 = scalar_select 0, %s9, %s7
  $region1: #{tpu_custom_call.1} parent=0
    #allocation2 [shape = 'u8[32768]{0}', space=vmem, size = 0x8000, scoped, tag = 'input window, operand 0, single buffered']
    #allocation3 [shape = 's32[1]{0}', space=sflag, size = 0x4, scoped, tag = 'scoped memory for tpu_custom_call.1']
    #allocation4 [shape = 's32[1]{0}', space=sflag, size = 0x4, scoped, tag = 'scoped memory for tpu_custom_call.1']
    #allocation5 [shape = 'u8[16384]{0}', space=vmem, size = 0x4000, scoped, tag = 'input window, operand 1, single buffered']
    #allocation6 [shape = 's32[1]{0}', space=sflag, size = 0x4, scoped, tag = 'scoped memory for tpu_custom_call.1']
    #allocation7 [shape = 'u8[8192]{0}', space=vmem, size = 0x2000, scoped, tag = 'input window, operand 3, single buffered']
    #allocation8 [shape = 'u8[16384]{0}', space=vmem, size = 0x4000, scoped, tag = 'input window, operand 4, single buffered']
    #allocation9 [shape = 's32[1]{0}', space=sflag, size = 0x4, scoped, tag = 'scoped memory for tpu_custom_call.1']
    #allocation10 [shape = 'u8[4096]{0}', space=vmem, size = 0x1000, scoped, tag = 'output window, operand 0, single buffered']
    %11 = vsyncpa [#allocation3], 0
    %12 = vsyncpa [#allocation6], 0
    %13 = vsyncpa [#allocation9], 0
    %14 = vsyncpa [#allocation4], 0
    // Predicated region
    $region2: #{tpu_custom_call.1} parent=1 // pred_check
      _
    $region3: #{tpu_custom_call.1} parent=1 // pred_check_branch
      %16 = sbr.rel (0) target = $region5
    $region4: #{tpu_custom_call.1} parent=1 // pred_region
      %s18 = ssub.s32 1024, 1024
      %19 = vsyncadd [#allocation3], %s18
      %s20 = sshll.u32 [#allocation2], 4
      %s21 = int_to_ptr.vmem [resolvable:$true] %s20
      %26 = dma.hbm_to_vmem [thread:$0]  %s0, 1024, %s21, [#allocation3], 64, 64, 4
    $region5: #{tpu_custom_call.1} parent=1 // pred_fallthru
      _
    // Predicated region
    $region6: #{tpu_custom_call.1} parent=1 // pred_check
      _
    $region7: #{tpu_custom_call.1} parent=1 // pred_check_branch
      %28 = sbr.rel (0) target = $region9
    $region8: #{tpu_custom_call.1} parent=1 // pred_region
      %s30 = ssub.s32 512, 512
      %31 = vsyncadd [#allocation6], %s30
      %s32 = sshll.u32 [#allocation5], 4
      %s33 = int_to_ptr.vmem [resolvable:$true] %s32
      %38 = dma.hbm_to_vmem [thread:$0]  %s1, 512, %s33, [#allocation6], 128, 128, 8
    $region9: #{tpu_custom_call.1} parent=1 // pred_fallthru
      _
    // Predicated region
    $region10: #{tpu_custom_call.1} parent=1 // pred_check
      _
    $region11: #{tpu_custom_call.1} parent=1 // pred_check_branch
      %40 = sbr.rel (0) target = $region13
    $region12: #{tpu_custom_call.1} parent=1 // pred_region
      _
    $region13: #{tpu_custom_call.1} parent=1 // pred_fallthru
      _
    // Predicated region
    $region14: #{tpu_custom_call.1} parent=1 // pred_check
      _
    $region15: #{tpu_custom_call.1} parent=1 // pred_check_branch
      %42 = sbr.rel (0) target = $region17
    $region16: #{tpu_custom_call.1} parent=1 // pred_region
      %s44 = ssub.s32 256, 256
      %45 = vsyncadd [#allocation6], %s44
      %s46 = sshll.u32 [#allocation7], 4
      %s47 = int_to_ptr.vmem [resolvable:$true] %s46
      %52 = dma.hbm_to_vmem [thread:$0]  %s3, 256, %s47, [#allocation6], 128, 128, 8
    $region17: #{tpu_custom_call.1} parent=1 // pred_fallthru
      _
    // Predicated region
    $region18: #{tpu_custom_call.1} parent=1 // pred_check
      _
    $region19: #{tpu_custom_call.1} parent=1 // pred_check_branch
      %54 = sbr.rel (0) target = $region21
    $region20: #{tpu_custom_call.1} parent=1 // pred_region
      %s56 = ssub.s32 512, 512
      %57 = vsyncadd [#allocation9], %s56
      %s58 = sshll.u32 [#allocation8], 4
      %s59 = int_to_ptr.vmem [resolvable:$true] %s58
      %64 = dma.hbm_to_vmem [thread:$0]  %s4, 512, %s59, [#allocation9], 128, 128, 8
    $region21: #{tpu_custom_call.1} parent=1 // pred_fallthru
      _
    // Predicated region
    $region22: #{tpu_custom_call.1} parent=1 // pred_check
      _
    $region23: #{tpu_custom_call.1} parent=1 // pred_check_branch
      %66 = sbr.rel (0) target = $region25
    $region24: #{tpu_custom_call.1} parent=1 // pred_region
      _
    $region25: #{tpu_custom_call.1} parent=1 // pred_fallthru
      _
    // Predicated region
    $region26: #{tpu_custom_call.1} parent=1 // pred_check
      _
    $region27: #{tpu_custom_call.1} parent=1 // pred_check_branch
      %68 = sbr.rel (0) target = $region29
    $region28: #{tpu_custom_call.1} parent=1 // pred_region
      %69 = dma.done [#allocation3], 1024
    $region29: #{tpu_custom_call.1} parent=1 // pred_fallthru
      _
    // Predicated region
    $region30: #{tpu_custom_call.1} parent=1 // pred_check
      _
    $region31: #{tpu_custom_call.1} parent=1 // pred_check_branch
      %71 = sbr.rel (0) target = $region33
    $region32: #{tpu_custom_call.1} parent=1 // pred_region
      %72 = dma.done [#allocation6], 512
    $region33: #{tpu_custom_call.1} parent=1 // pred_fallthru
      _
    // Predicated region
    $region34: #{tpu_custom_call.1} parent=1 // pred_check
      _
    $region35: #{tpu_custom_call.1} parent=1 // pred_check_branch
      %74 = sbr.rel (0) target = $region37
    $region36: #{tpu_custom_call.1} parent=1 // pred_region
      %75 = dma.done [#allocation6], 256
    $region37: #{tpu_custom_call.1} parent=1 // pred_fallthru
      _
    // Predicated region
    $region38: #{tpu_custom_call.1} parent=1 // pred_check
      _
    $region39: #{tpu_custom_call.1} parent=1 // pred_check_branch
      %77 = sbr.rel (0) target = $region41
    $region40: #{tpu_custom_call.1} parent=1 // pred_region
      %78 = dma.done [#allocation9], 512
    $region41: #{tpu_custom_call.1} parent=1 // pred_fallthru
      _
    %v80 = vld [vmem:[#allocation2] sm:$0xf]
    %v81 = vld [vmem:[#allocation2 + $0x4] sm:$0xf]
    %v82 = vld [vmem:[#allocation2 + $0x8] sm:$0xf]
    %v83 = vld [vmem:[#allocation2 + $0xc] sm:$0xf]
    %v84 = vld [vmem:[#allocation2 + $0x10] sm:$0xf]
    %v85 = vld [vmem:[#allocation2 + $0x14] sm:$0xf]
    %v86 = vld [vmem:[#allocation2 + $0x18] sm:$0xf]
    %v87 = vld [vmem:[#allocation2 + $0x1c] sm:$0xf]
    %v88 = vld [vmem:[#allocation2 + $0x20] sm:$0xf]
    %v89 = vld [vmem:[#allocation2 + $0x24] sm:$0xf]
    %v90 = vld [vmem:[#allocation2 + $0x28] sm:$0xf]
    %v91 = vld [vmem:[#allocation2 + $0x2c] sm:$0xf]
    %v92 = vld [vmem:[#allocation2 + $0x30] sm:$0xf]
    %v93 = vld [vmem:[#allocation2 + $0x34] sm:$0xf]
    %v94 = vld [vmem:[#allocation2 + $0x38] sm:$0xf]
    %v95 = vld [vmem:[#allocation2 + $0x3c] sm:$0xf]
    %v96 = vld [vmem:[#allocation5] sm:$0xff]
    %v97 = vld [vmem:[#allocation5 + $0x8] sm:$0xff]
    %v98 = vld [vmem:[#allocation5 + $0x10] sm:$0xff]
    %v99 = vld [vmem:[#allocation5 + $0x18] sm:$0xff]
    %v116 = vunpack.c.l.b16 %v80
    %v117 = vunpack.c.l.b16 %v81
    %v118 = vunpack.c.l.b16 %v82
    %v119 = vunpack.c.l.b16 %v83
    %v120 = vunpack.c.l.b16 %v84
    %v121 = vunpack.c.l.b16 %v85
    %v122 = vunpack.c.l.b16 %v86
    %v123 = vunpack.c.l.b16 %v87
    %v124 = vunpack.c.l.b16 %v88
    %v125 = vunpack.c.l.b16 %v89
    %v126 = vunpack.c.l.b16 %v90
    %v127 = vunpack.c.l.b16 %v91
    %v128 = vunpack.c.l.b16 %v92
    %v129 = vunpack.c.l.b16 %v93
    %v130 = vunpack.c.l.b16 %v94
    %v131 = vunpack.c.l.b16 %v95
    %v132 = vpack.c.b16 %v117, %v116
    %v133 = vpack.c.b16 %v119, %v118
    %v134 = vpack.c.b16 %v121, %v120
    %v135 = vpack.c.b16 %v123, %v122
    %v136 = vpack.c.b16 %v125, %v124
    %v137 = vpack.c.b16 %v127, %v126
    %v138 = vpack.c.b16 %v129, %v128
    %v139 = vpack.c.b16 %v131, %v130
    %v144 = vunpack.c.l.b16 %v96
    %v145 = vunpack.c.h.b16 %v96
    %v146 = vunpack.c.l.b16 %v97
    %v147 = vunpack.c.h.b16 %v97
    %v148 = vunpack.c.l.b16 %v98
    %v149 = vunpack.c.h.b16 %v98
    %v150 = vunpack.c.l.b16 %v99
    %v151 = vunpack.c.h.b16 %v99
    %v152 = vpack.c.b16 %v146, %v144
    %v153 = vpack.c.b16 %v147, %v145
    %v154 = vpack.c.b16 %v150, %v148
    %v155 = vpack.c.b16 %v151, %v149
    %vm160 = vcmask 261120
    %v162 = vsel %vm160, %v132, 0
    %v165 = vsel %vm160, %v133, 0
    %v168 = vsel %vm160, %v134, 0
    %v171 = vsel %vm160, %v135, 0
    %v174 = vsel %vm160, %v136, 0
    %v177 = vsel %vm160, %v137, 0
    %v180 = vsel %vm160, %v138, 0
    %v183 = vsel %vm160, %v139, 0
    %185 = vmatprep.subr.bf16.mxu0 0
    %186 = vmatpush1.bf16.msra.mxu0 0
    %187 = vmatprep.subr.bf16.mxu0 0
    %188 = vmatpush1.bf16.msra.mxu0 0
    %189 = vmatprep.subr.bf16.mxu0 0
    %190 = vmatpush1.bf16.msra.mxu0 0
    %191 = vmatprep.subr.bf16.mxu0 0
    %192 = vmatpush1.bf16.msra.mxu0 0
    %193 = vmatprep.subr.bf16.mxu0 0
    %194 = vmatpush1.bf16.msra.mxu0 0
    %195 = vmatprep.subr.bf16.mxu0 0
    %196 = vmatpush1.bf16.msra.mxu0 0
    %197 = vmatprep.subr.bf16.mxu0 %v155
    %198 = vmatpush1.bf16.msra.mxu0 %v154
    %199 = vmatprep.subr.bf16.mxu0 %v153
    %200 = vmatpush1.bf16.msra.mxu0 %v152
    %201 = vmatprep.subr.bf16.mxu0 0
    %202 = vmatpush2.bf16.msra.mxu0 0
    %203 = vmatprep.subr.bf16.mxu0 0
    %204 = vmatpush2.bf16.msra.mxu0 0
    %205 = vmatprep.subr.bf16.mxu0 0
    %206 = vmatpush2.bf16.msra.mxu0 0
    %207 = vmatprep.subr.bf16.mxu0 0
    %208 = vmatpush2.bf16.msra.mxu0 0
    %209 = vmatprep.subr.bf16.mxu0 0
    %210 = vmatpush2.bf16.msra.mxu0 0
    %211 = vmatprep.subr.bf16.mxu0 0
    %212 = vmatpush2.bf16.msra.mxu0 0
    %213 = vmatprep.subr.bf16.mxu0 0
    %214 = vmatpush2.bf16.msra.mxu0 0
    %215 = vmatprep.subr.bf16.mxu0 0
    %216 = vmatpush2.bf16.msra.mxu0 0
    %217 = vmatprep.mubr.bf16.mxu0 0
    %218 = vmatmul.mubr.bf16.gmra.mxu0 %v162
    %v219 = vpop.f32.mrf.mxu0
    %v220 = vadd.f32 0.0, %v219
    %v221 = vpop.f32.mrf.mxu0
    %v222 = vadd.f32 0.0, %v221
    %v223 = vpop.f32.mrf.mxu0
    %v224 = vadd.f32 0.0, %v223
    %v225 = vpop.f32.mrf.mxu0
    %v226 = vadd.f32 0.0, %v225
    %227 = vmatprep.mubr.bf16.mxu0 0
    %228 = vmatmul.mubr.bf16.gmra.mxu0 %v165
    %v229 = vpop.f32.mrf.mxu0
    %v230 = vadd.f32 0.0, %v229
    %v231 = vpop.f32.mrf.mxu0
    %v232 = vadd.f32 0.0, %v231
    %v233 = vpop.f32.mrf.mxu0
    %v234 = vadd.f32 0.0, %v233
    %v235 = vpop.f32.mrf.mxu0
    %v236 = vadd.f32 0.0, %v235
    %237 = vmatprep.mubr.bf16.mxu0 0
    %238 = vmatmul.mubr.bf16.gmra.mxu0 %v168
    %v239 = vpop.f32.mrf.mxu0
    %v240 = vadd.f32 0.0, %v239
    %v241 = vpop.f32.mrf.mxu0
    %v242 = vadd.f32 0.0, %v241
    %v243 = vpop.f32.mrf.mxu0
    %v244 = vadd.f32 0.0, %v243
    %v245 = vpop.f32.mrf.mxu0
    %v246 = vadd.f32 0.0, %v245
    %247 = vmatprep.mubr.bf16.mxu0 0
    %248 = vmatmul.mubr.bf16.gmra.mxu0 %v171
    %v249 = vpop.f32.mrf.mxu0
    %v250 = vadd.f32 0.0, %v249
    %v251 = vpop.f32.mrf.mxu0
    %v252 = vadd.f32 0.0, %v251
    %v253 = vpop.f32.mrf.mxu0
    %v254 = vadd.f32 0.0, %v253
    %v255 = vpop.f32.mrf.mxu0
    %v256 = vadd.f32 0.0, %v255
    %257 = vmatprep.mubr.bf16.mxu0 0
    %258 = vmatmul.mubr.bf16.gmra.mxu0 %v174
    %v259 = vpop.f32.mrf.mxu0
    %v260 = vadd.f32 0.0, %v259
    %v261 = vpop.f32.mrf.mxu0
    %v262 = vadd.f32 0.0, %v261
    %v263 = vpop.f32.mrf.mxu0
    %v264 = vadd.f32 0.0, %v263
    %v265 = vpop.f32.mrf.mxu0
    %v266 = vadd.f32 0.0, %v265
    %267 = vmatprep.mubr.bf16.mxu0 0
    %268 = vmatmul.mubr.bf16.gmra.mxu0 %v177
    %v269 = vpop.f32.mrf.mxu0
    %v270 = vadd.f32 0.0, %v269
    %v271 = vpop.f32.mrf.mxu0
    %v272 = vadd.f32 0.0, %v271
    %v273 = vpop.f32.mrf.mxu0
    %v274 = vadd.f32 0.0, %v273
    %v275 = vpop.f32.mrf.mxu0
    %v276 = vadd.f32 0.0, %v275
    %277 = vmatprep.mubr.bf16.mxu0 0
    %278 = vmatmul.mubr.bf16.gmra.mxu0 %v180
    %v279 = vpop.f32.mrf.mxu0
    %v280 = vadd.f32 0.0, %v279
    %v281 = vpop.f32.mrf.mxu0
    %v282 = vadd.f32 0.0, %v281
    %v283 = vpop.f32.mrf.mxu0
    %v284 = vadd.f32 0.0, %v283
    %v285 = vpop.f32.mrf.mxu0
    %v286 = vadd.f32 0.0, %v285
    %287 = vmatprep.mubr.bf16.mxu0 0
    %288 = vmatmul.mubr.bf16.gmra.mxu0 %v183
    %v289 = vpop.f32.mrf.mxu0
    %v290 = vadd.f32 0.0, %v289
    %v291 = vpop.f32.mrf.mxu0
    %v292 = vadd.f32 0.0, %v291
    %v293 = vpop.f32.mrf.mxu0
    %v294 = vadd.f32 0.0, %v293
    %v295 = vpop.f32.mrf.mxu0
    %v296 = vadd.f32 0.0, %v295
    %297 = vdwg.mxu0
    %314 = vrot.lane.b32.xlu0 %v220, 96
    %v315 = vpop.permute.xlu0 %314
    %316 = vrot.lane.b32.xlu0 %v224, 96
    %v317 = vpop.permute.xlu0 %316
    %318 = vrot.lane.b32.xlu0 %v230, 96
    %v319 = vpop.permute.xlu0 %318
    %320 = vrot.lane.b32.xlu0 %v234, 96
    %v321 = vpop.permute.xlu0 %320
    %322 = vrot.lane.b32.xlu0 %v240, 96
    %v323 = vpop.permute.xlu0 %322
    %324 = vrot.lane.b32.xlu0 %v244, 96
    %v325 = vpop.permute.xlu0 %324
    %326 = vrot.lane.b32.xlu0 %v250, 96
    %v327 = vpop.permute.xlu0 %326
    %328 = vrot.lane.b32.xlu0 %v254, 96
    %v329 = vpop.permute.xlu0 %328
    %330 = vrot.lane.b32.xlu0 %v260, 96
    %v331 = vpop.permute.xlu0 %330
    %332 = vrot.lane.b32.xlu0 %v264, 96
    %v333 = vpop.permute.xlu0 %332
    %334 = vrot.lane.b32.xlu0 %v270, 96
    %v335 = vpop.permute.xlu0 %334
    %336 = vrot.lane.b32.xlu0 %v274, 96
    %v337 = vpop.permute.xlu0 %336
    %338 = vrot.lane.b32.xlu0 %v280, 96
    %v339 = vpop.permute.xlu0 %338
    %340 = vrot.lane.b32.xlu0 %v284, 96
    %v341 = vpop.permute.xlu0 %340
    %342 = vrot.lane.b32.xlu0 %v290, 96
    %v343 = vpop.permute.xlu0 %342
    %344 = vrot.lane.b32.xlu0 %v294, 96
    %v345 = vpop.permute.xlu0 %344
    %v362 = vrot.slane %v315, 1
    %v363 = vrot.slane %v317, 1
    %v364 = vrot.slane %v319, 1
    %v365 = vrot.slane %v321, 1
    %v366 = vrot.slane %v323, 1
    %v367 = vrot.slane %v325, 1
    %v368 = vrot.slane %v327, 1
    %v369 = vrot.slane %v329, 1
    %v370 = vrot.slane %v331, 1
    %v371 = vrot.slane %v333, 1
    %v372 = vrot.slane %v335, 1
    %v373 = vrot.slane %v337, 1
    %v374 = vrot.slane %v339, 1
    %v375 = vrot.slane %v341, 1
    %v376 = vrot.slane %v343, 1
    %v377 = vrot.slane %v345, 1
    %v378 = vlaneseq
    %v379 = vshrl.u32 %v378, 7
    %vm380 = vcmp.lt.s32.totalorder %v379, 7
    %v381 = vsel %vm380, %v376, %v377
    %v382 = vsel %vm380, %v375, %v376
    %v383 = vsel %vm380, %v374, %v375
    %v384 = vsel %vm380, %v373, %v374
    %v385 = vsel %vm380, %v372, %v373
    %v386 = vsel %vm380, %v371, %v372
    %v387 = vsel %vm380, %v370, %v371
    %v388 = vsel %vm380, %v369, %v370
    %v389 = vsel %vm380, %v368, %v369
    %v390 = vsel %vm380, %v367, %v368
    %v391 = vsel %vm380, %v366, %v367
    %v392 = vsel %vm380, %v365, %v366
    %v393 = vsel %vm380, %v364, %v365
    %v394 = vsel %vm380, %v363, %v364
    %v395 = vsel %vm380, %v362, %v363
    %v396 = vsel %vm380, %v377, %v362
    %v397 = vadd.f32 %v220, %v395
    %v398 = vadd.f32 %v224, %v394
    %v399 = vadd.f32 %v230, %v393
    %v400 = vadd.f32 %v234, %v392
    %v401 = vadd.f32 %v240, %v391
    %v402 = vadd.f32 %v244, %v390
    %v403 = vadd.f32 %v250, %v389
    %v404 = vadd.f32 %v254, %v388
    %v405 = vadd.f32 %v260, %v387
    %v406 = vadd.f32 %v264, %v386
    %v407 = vadd.f32 %v270, %v385
    %v408 = vadd.f32 %v274, %v384
    %v409 = vadd.f32 %v280, %v383
    %v410 = vadd.f32 %v284, %v382
    %v411 = vadd.f32 %v290, %v381
    %v412 = vadd.f32 %v294, %v396
    %413 = vrot.lane.b32.xlu0 %v220, 64
    %v414 = vpop.permute.xlu0 %413
    %415 = vrot.lane.b32.xlu0 %v224, 64
    %v416 = vpop.permute.xlu0 %415
    %417 = vrot.lane.b32.xlu0 %v230, 64
    %v418 = vpop.permute.xlu0 %417
    %419 = vrot.lane.b32.xlu0 %v234, 64
    %v420 = vpop.permute.xlu0 %419
    %421 = vrot.lane.b32.xlu0 %v240, 64
    %v422 = vpop.permute.xlu0 %421
    %423 = vrot.lane.b32.xlu0 %v244, 64
    %v424 = vpop.permute.xlu0 %423
    %425 = vrot.lane.b32.xlu0 %v250, 64
    %v426 = vpop.permute.xlu0 %425
    %427 = vrot.lane.b32.xlu0 %v254, 64
    %v428 = vpop.permute.xlu0 %427
    %429 = vrot.lane.b32.xlu0 %v260, 64
    %v430 = vpop.permute.xlu0 %429
    %431 = vrot.lane.b32.xlu0 %v264, 64
    %v432 = vpop.permute.xlu0 %431
    %433 = vrot.lane.b32.xlu0 %v270, 64
    %v434 = vpop.permute.xlu0 %433
    %435 = vrot.lane.b32.xlu0 %v274, 64
    %v436 = vpop.permute.xlu0 %435
    %437 = vrot.lane.b32.xlu0 %v280, 64
    %v438 = vpop.permute.xlu0 %437
    %439 = vrot.lane.b32.xlu0 %v284, 64
    %v440 = vpop.permute.xlu0 %439
    %441 = vrot.lane.b32.xlu0 %v290, 64
    %v442 = vpop.permute.xlu0 %441
    %443 = vrot.lane.b32.xlu0 %v294, 64
    %v444 = vpop.permute.xlu0 %443
    %v461 = vrot.slane %v414, 2
    %v462 = vrot.slane %v416, 2
    %v463 = vrot.slane %v418, 2
    %v464 = vrot.slane %v420, 2
    %v465 = vrot.slane %v422, 2
    %v466 = vrot.slane %v424, 2
    %v467 = vrot.slane %v426, 2
    %v468 = vrot.slane %v428, 2
    %v469 = vrot.slane %v430, 2
    %v470 = vrot.slane %v432, 2
    %v471 = vrot.slane %v434, 2
    %v472 = vrot.slane %v436, 2
    %v473 = vrot.slane %v438, 2
    %v474 = vrot.slane %v440, 2
    %v475 = vrot.slane %v442, 2
    %v476 = vrot.slane %v444, 2
    %vm477 = vcmp.lt.s32.totalorder %v379, 6
    %v478 = vsel %vm477, %v475, %v476
    %v479 = vsel %vm477, %v474, %v475
    %v480 = vsel %vm477, %v473, %v474
    %v481 = vsel %vm477, %v472, %v473
    %v482 = vsel %vm477, %v471, %v472
    %v483 = vsel %vm477, %v470, %v471
    %v484 = vsel %vm477, %v469, %v470
    %v485 = vsel %vm477, %v468, %v469
    %v486 = vsel %vm477, %v467, %v468
    %v487 = vsel %vm477, %v466, %v467
    %v488 = vsel %vm477, %v465, %v466
    %v489 = vsel %vm477, %v464, %v465
    %v490 = vsel %vm477, %v463, %v464
    %v491 = vsel %vm477, %v462, %v463
    %v492 = vsel %vm477, %v461, %v462
    %v493 = vsel %vm477, %v476, %v461
    %v494 = vadd.f32 %v397, %v492
    %v495 = vadd.f32 %v398, %v491
    %v496 = vadd.f32 %v399, %v490
    %v497 = vadd.f32 %v400, %v489
    %v498 = vadd.f32 %v401, %v488
    %v499 = vadd.f32 %v402, %v487
    %v500 = vadd.f32 %v403, %v486
    %v501 = vadd.f32 %v404, %v485
    %v502 = vadd.f32 %v405, %v484
    %v503 = vadd.f32 %v406, %v483
    %v504 = vadd.f32 %v407, %v482
    %v505 = vadd.f32 %v408, %v481
    %v506 = vadd.f32 %v409, %v480
    %v507 = vadd.f32 %v410, %v479
    %v508 = vadd.f32 %v411, %v478
    %v509 = vadd.f32 %v412, %v493
    %510 = vrot.lane.b32.xlu0 %v220, 32
    %v511 = vpop.permute.xlu0 %510
    %512 = vrot.lane.b32.xlu0 %v224, 32
    %v513 = vpop.permute.xlu0 %512
    %514 = vrot.lane.b32.xlu0 %v230, 32
    %v515 = vpop.permute.xlu0 %514
    %516 = vrot.lane.b32.xlu0 %v234, 32
    %v517 = vpop.permute.xlu0 %516
    %518 = vrot.lane.b32.xlu0 %v240, 32
    %v519 = vpop.permute.xlu0 %518
    %520 = vrot.lane.b32.xlu0 %v244, 32
    %v521 = vpop.permute.xlu0 %520
    %522 = vrot.lane.b32.xlu0 %v250, 32
    %v523 = vpop.permute.xlu0 %522
    %524 = vrot.lane.b32.xlu0 %v254, 32
    %v525 = vpop.permute.xlu0 %524
    %526 = vrot.lane.b32.xlu0 %v260, 32
    %v527 = vpop.permute.xlu0 %526
    %528 = vrot.lane.b32.xlu0 %v264, 32
    %v529 = vpop.permute.xlu0 %528
    %530 = vrot.lane.b32.xlu0 %v270, 32
    %v531 = vpop.permute.xlu0 %530
    %532 = vrot.lane.b32.xlu0 %v274, 32
    %v533 = vpop.permute.xlu0 %532
    %534 = vrot.lane.b32.xlu0 %v280, 32
    %v535 = vpop.permute.xlu0 %534
    %536 = vrot.lane.b32.xlu0 %v284, 32
    %v537 = vpop.permute.xlu0 %536
    %538 = vrot.lane.b32.xlu0 %v290, 32
    %v539 = vpop.permute.xlu0 %538
    %540 = vrot.lane.b32.xlu0 %v294, 32
    %v541 = vpop.permute.xlu0 %540
    %v558 = vrot.slane %v511, 3
    %v559 = vrot.slane %v513, 3
    %v560 = vrot.slane %v515, 3
    %v561 = vrot.slane %v517, 3
    %v562 = vrot.slane %v519, 3
    %v563 = vrot.slane %v521, 3
    %v564 = vrot.slane %v523, 3
    %v565 = vrot.slane %v525, 3
    %v566 = vrot.slane %v527, 3
    %v567 = vrot.slane %v529, 3
    %v568 = vrot.slane %v531, 3
    %v569 = vrot.slane %v533, 3
    %v570 = vrot.slane %v535, 3
    %v571 = vrot.slane %v537, 3
    %v572 = vrot.slane %v539, 3
    %v573 = vrot.slane %v541, 3
    %vm574 = vcmp.lt.s32.totalorder %v379, 5
    %v575 = vsel %vm574, %v572, %v573
    %v576 = vsel %vm574, %v571, %v572
    %v577 = vsel %vm574, %v570, %v571
    %v578 = vsel %vm574, %v569, %v570
    %v579 = vsel %vm574, %v568, %v569
    %v580 = vsel %vm574, %v567, %v568
    %v581 = vsel %vm574, %v566, %v567
    %v582 = vsel %vm574, %v565, %v566
    %v583 = vsel %vm574, %v564, %v565
    %v584 = vsel %vm574, %v563, %v564
    %v585 = vsel %vm574, %v562, %v563
    %v586 = vsel %vm574, %v561, %v562
    %v587 = vsel %vm574, %v560, %v561
    %v588 = vsel %vm574, %v559, %v560
    %v589 = vsel %vm574, %v558, %v559
    %v590 = vsel %vm574, %v573, %v558
    %v591 = vadd.f32 %v494, %v589
    %v592 = vadd.f32 %v495, %v588
    %v593 = vadd.f32 %v496, %v587
    %v594 = vadd.f32 %v497, %v586
    %v595 = vadd.f32 %v498, %v585
    %v596 = vadd.f32 %v499, %v584
    %v597 = vadd.f32 %v500, %v583
    %v598 = vadd.f32 %v501, %v582
    %v599 = vadd.f32 %v502, %v581
    %v600 = vadd.f32 %v503, %v580
    %v601 = vadd.f32 %v504, %v579
    %v602 = vadd.f32 %v505, %v578
    %v603 = vadd.f32 %v506, %v577
    %v604 = vadd.f32 %v507, %v576
    %v605 = vadd.f32 %v508, %v575
    %v606 = vadd.f32 %v509, %v590
    %v607 = vrot.slane %v222, 4
    %v608 = vrot.slane %v226, 4
    %v609 = vrot.slane %v232, 4
    %v610 = vrot.slane %v236, 4
    %v611 = vrot.slane %v242, 4
    %v612 = vrot.slane %v246, 4
    %v613 = vrot.slane %v252, 4
    %v614 = vrot.slane %v256, 4
    %v615 = vrot.slane %v262, 4
    %v616 = vrot.slane %v266, 4
    %v617 = vrot.slane %v272, 4
    %v618 = vrot.slane %v276, 4
    %v619 = vrot.slane %v282, 4
    %v620 = vrot.slane %v286, 4
    %v621 = vrot.slane %v292, 4
    %v622 = vrot.slane %v296, 4
    %vm623 = vcmp.lt.s32.totalorder %v379, 4
    %v624 = vsel %vm623, %v621, %v622
    %v625 = vsel %vm623, %v620, %v621
    %v626 = vsel %vm623, %v619, %v620
    %v627 = vsel %vm623, %v618, %v619
    %v628 = vsel %vm623, %v617, %v618
    %v629 = vsel %vm623, %v616, %v617
    %v630 = vsel %vm623, %v615, %v616
    %v631 = vsel %vm623, %v614, %v615
    %v632 = vsel %vm623, %v613, %v614
    %v633 = vsel %vm623, %v612, %v613
    %v634 = vsel %vm623, %v611, %v612
    %v635 = vsel %vm623, %v610, %v611
    %v636 = vsel %vm623, %v609, %v610
    %v637 = vsel %vm623, %v608, %v609
    %v638 = vsel %vm623, %v607, %v608
    %v639 = vsel %vm623, %v622, %v607
    %v640 = vadd.f32 %v591, %v638
    %v641 = vadd.f32 %v592, %v637
    %v642 = vadd.f32 %v593, %v636
    %v643 = vadd.f32 %v594, %v635
    %v644 = vadd.f32 %v595, %v634
    %v645 = vadd.f32 %v596, %v633
    %v646 = vadd.f32 %v597, %v632
    %v647 = vadd.f32 %v598, %v631
    %v648 = vadd.f32 %v599, %v630
    %v649 = vadd.f32 %v600, %v629
    %v650 = vadd.f32 %v601, %v628
    %v651 = vadd.f32 %v602, %v627
    %v652 = vadd.f32 %v603, %v626
    %v653 = vadd.f32 %v604, %v625
    %v654 = vadd.f32 %v605, %v624
    %v655 = vadd.f32 %v606, %v639
    %v656 = vld [vmem:[%s2] sm:$0x1]
    %v658 = vlaneseq
    %v659 = vshrl.u32 %v658, 7
    %v660 = vsub.s32 0, %v659
    %v661 = vrot.slane %v656, %v660
    %v663 = vadd.f32 %v640, %v661
    %v664 = vadd.f32 %v641, %v661
    %v665 = vadd.f32 %v642, %v661
    %v666 = vadd.f32 %v643, %v661
    %v667 = vadd.f32 %v644, %v661
    %v668 = vadd.f32 %v645, %v661
    %v669 = vadd.f32 %v646, %v661
    %v670 = vadd.f32 %v647, %v661
    %v671 = vadd.f32 %v648, %v661
    %v672 = vadd.f32 %v649, %v661
    %v673 = vadd.f32 %v650, %v661
    %v674 = vadd.f32 %v651, %v661
    %v675 = vadd.f32 %v652, %v661
    %v676 = vadd.f32 %v653, %v661
    %v677 = vadd.f32 %v654, %v661
    %v678 = vadd.f32 %v655, %v661
    %v679 = vmax.f32 %v663, 0.0
    %v680 = vmax.f32 %v664, 0.0
    %v681 = vmax.f32 %v665, 0.0
    %v682 = vmax.f32 %v666, 0.0
    %v683 = vmax.f32 %v667, 0.0
    %v684 = vmax.f32 %v668, 0.0
    %v685 = vmax.f32 %v669, 0.0
    %v686 = vmax.f32 %v670, 0.0
    %v687 = vmax.f32 %v671, 0.0
    %v688 = vmax.f32 %v672, 0.0
    %v689 = vmax.f32 %v673, 0.0
    %v690 = vmax.f32 %v674, 0.0
    %v691 = vmax.f32 %v675, 0.0
    %v692 = vmax.f32 %v676, 0.0
    %v693 = vmax.f32 %v677, 0.0
    %v694 = vmax.f32 %v678, 0.0
    %v695 = vld [vmem:[#allocation7] sm:$0xff]
    %v696 = vld [vmem:[#allocation7 + $0x8] sm:$0xff]
    %v697 = vadd.f32 %v679, %v695
    %v698 = vadd.f32 %v680, %v696
    %v699 = vadd.f32 %v681, %v695
    %v700 = vadd.f32 %v682, %v696
    %v701 = vadd.f32 %v683, %v695
    %v702 = vadd.f32 %v684, %v696
    %v703 = vadd.f32 %v685, %v695
    %v704 = vadd.f32 %v686, %v696
    %v705 = vadd.f32 %v687, %v695
    %v706 = vadd.f32 %v688, %v696
    %v707 = vadd.f32 %v689, %v695
    %v708 = vadd.f32 %v690, %v696
    %v709 = vadd.f32 %v691, %v695
    %v710 = vadd.f32 %v692, %v696
    %v711 = vadd.f32 %v693, %v695
    %v712 = vadd.f32 %v694, %v696
    %v713 = vsel %vm160, %v697, -inf
    %v714 = vsel %vm160, %v698, -inf
    %v715 = vmax.f32 %v713, %v714
    %v716 = vrot.slane %v715, 4
    %v717 = vmax.f32 %v715, %v716
    %v718 = vrot.slane %v717, 2
    %v719 = vmax.f32 %v717, %v718
    %v720 = vrot.slane %v719, 1
    %v721 = vmax.f32 %v719, %v720
    %v722 = vsel %vm160, %v699, -inf
    %v723 = vsel %vm160, %v700, -inf
    %v724 = vmax.f32 %v722, %v723
    %v725 = vrot.slane %v724, 4
    %v726 = vmax.f32 %v724, %v725
    %v727 = vrot.slane %v726, 2
    %v728 = vmax.f32 %v726, %v727
    %v729 = vrot.slane %v728, 1
    %v730 = vmax.f32 %v728, %v729
    %v731 = vsel %vm160, %v701, -inf
    %v732 = vsel %vm160, %v702, -inf
    %v733 = vmax.f32 %v731, %v732
    %v734 = vrot.slane %v733, 4
    %v735 = vmax.f32 %v733, %v734
    %v736 = vrot.slane %v735, 2
    %v737 = vmax.f32 %v735, %v736
    %v738 = vrot.slane %v737, 1
    %v739 = vmax.f32 %v737, %v738
    %v740 = vsel %vm160, %v703, -inf
    %v741 = vsel %vm160, %v704, -inf
    %v742 = vmax.f32 %v740, %v741
    %v743 = vrot.slane %v742, 4
    %v744 = vmax.f32 %v742, %v743
    %v745 = vrot.slane %v744, 2
    %v746 = vmax.f32 %v744, %v745
    %v747 = vrot.slane %v746, 1
    %v748 = vmax.f32 %v746, %v747
    %v749 = vsel %vm160, %v705, -inf
    %v750 = vsel %vm160, %v706, -inf
    %v751 = vmax.f32 %v749, %v750
    %v752 = vrot.slane %v751, 4
    %v753 = vmax.f32 %v751, %v752
    %v754 = vrot.slane %v753, 2
    %v755 = vmax.f32 %v753, %v754
    %v756 = vrot.slane %v755, 1
    %v757 = vmax.f32 %v755, %v756
    %v758 = vsel %vm160, %v707, -inf
    %v759 = vsel %vm160, %v708, -inf
    %v760 = vmax.f32 %v758, %v759
    %v761 = vrot.slane %v760, 4
    %v762 = vmax.f32 %v760, %v761
    %v763 = vrot.slane %v762, 2
    %v764 = vmax.f32 %v762, %v763
    %v765 = vrot.slane %v764, 1
    %v766 = vmax.f32 %v764, %v765
    %v767 = vsel %vm160, %v709, -inf
    %v768 = vsel %vm160, %v710, -inf
    %v769 = vmax.f32 %v767, %v768
    %v770 = vrot.slane %v769, 4
    %v771 = vmax.f32 %v769, %v770
    %v772 = vrot.slane %v771, 2
    %v773 = vmax.f32 %v771, %v772
    %v774 = vrot.slane %v773, 1
    %v775 = vmax.f32 %v773, %v774
    %v776 = vsel %vm160, %v711, -inf
    %v777 = vsel %vm160, %v712, -inf
    %v778 = vmax.f32 %v776, %v777
    %v779 = vrot.slane %v778, 4
    %v780 = vmax.f32 %v778, %v779
    %v781 = vrot.slane %v780, 2
    %v782 = vmax.f32 %v780, %v781
    %v783 = vrot.slane %v782, 1
    %v784 = vmax.f32 %v782, %v783
    %v785 = vld [vmem:[#allocation8] sm:$0xff]
    %v786 = vld [vmem:[#allocation8 + $0x8] sm:$0xff]
    %v787 = vld [vmem:[#allocation8 + $0x10] sm:$0xff]
    %v788 = vld [vmem:[#allocation8 + $0x18] sm:$0xff]
    %v789 = vld [vmem:[%s5] sm:$0x1]
    %v791 = vlaneseq
    %v792 = vshrl.u32 %v791, 7
    %v793 = vsub.s32 0, %v792
    %v794 = vrot.slane %v789, %v793
    %vm804 = vcmask 1041409
    %v805 = vsel %vm804, %v730, %v721
    %vm806 = vcmask 1042434
    %v807 = vsel %vm806, %v739, %v805
    %vm808 = vcmask 1043459
    %v809 = vsel %vm808, %v748, %v807
    %vm810 = vcmask 1044484
    %v811 = vsel %vm810, %v757, %v809
    %vm812 = vcmask 1045509
    %v813 = vsel %vm812, %v766, %v811
    %vm814 = vcmask 1046534
    %v815 = vsel %vm814, %v775, %v813
    %vm816 = vcmask 1047559
    %v817 = vsel %vm816, %v784, %v815
    %v818 = vsel %vm160, %v817, 0
    %820 = vmatprep.subr.mxu0 0.0
    %821 = vmatpush1.msra.mxu0 0.0
    %822 = vmatprep.subr.mxu0 0.0
    %823 = vmatpush1.msra.mxu0 0.0
    %824 = vmatprep.subr.mxu0 0.0
    %825 = vmatpush1.msra.mxu0 0.0
    %826 = vmatprep.subr.mxu0 0.0
    %827 = vmatpush1.msra.mxu0 0.0
    %828 = vmatprep.subr.mxu0 0.0
    %829 = vmatpush1.msra.mxu0 0.0
    %830 = vmatprep.subr.mxu0 0.0
    %831 = vmatpush1.msra.mxu0 0.0
    %832 = vmatprep.subr.mxu0 0.0
    %833 = vmatpush1.msra.mxu0 0.0
    %834 = vmatprep.subr.mxu0 0.0
    %835 = vmatpush1.msra.mxu0 0.0
    %836 = vmatprep.subr.mxu0 0.0
    %837 = vmatpush1.msra.mxu0 0.0
    %838 = vmatprep.subr.mxu0 0.0
    %839 = vmatpush1.msra.mxu0 0.0
    %840 = vmatprep.subr.mxu0 0.0
    %841 = vmatpush1.msra.mxu0 0.0
    %842 = vmatprep.subr.mxu0 0.0
    %843 = vmatpush1.msra.mxu0 0.0
    %844 = vmatprep.subr.mxu0 0.0
    %845 = vmatpush1.msra.mxu0 %v788
    %846 = vmatprep.subr.mxu0 0.0
    %847 = vmatpush1.msra.mxu0 %v787
    %848 = vmatprep.subr.mxu0 0.0
    %849 = vmatpush1.msra.mxu0 %v786
    %850 = vmatprep.subr.mxu0 0.0
    %851 = vmatpush1.msra.mxu0 %v785
    %852 = vmatprep.subr.mxu0 0.0
    %853 = vmatpush2.msra.mxu0 0.0
    %854 = vmatprep.subr.mxu0 0.0
    %855 = vmatpush2.msra.mxu0 0.0
    %856 = vmatprep.subr.mxu0 0.0
    %857 = vmatpush2.msra.mxu0 0.0
    %858 = vmatprep.subr.mxu0 0.0
    %859 = vmatpush2.msra.mxu0 0.0
    %860 = vmatprep.subr.mxu0 0.0
    %861 = vmatpush2.msra.mxu0 0.0
    %862 = vmatprep.subr.mxu0 0.0
    %863 = vmatpush2.msra.mxu0 0.0
    %864 = vmatprep.subr.mxu0 0.0
    %865 = vmatpush2.msra.mxu0 0.0
    %866 = vmatprep.subr.mxu0 0.0
    %867 = vmatpush2.msra.mxu0 0.0
    %868 = vmatprep.subr.mxu0 0.0
    %869 = vmatpush2.msra.mxu0 0.0
    %870 = vmatprep.subr.mxu0 0.0
    %871 = vmatpush2.msra.mxu0 0.0
    %872 = vmatprep.subr.mxu0 0.0
    %873 = vmatpush2.msra.mxu0 0.0
    %874 = vmatprep.subr.mxu0 0.0
    %875 = vmatpush2.msra.mxu0 0.0
    %876 = vmatprep.subr.mxu0 0.0
    %877 = vmatpush2.msra.mxu0 0.0
    %878 = vmatprep.subr.mxu0 0.0
    %879 = vmatpush2.msra.mxu0 0.0
    %880 = vmatprep.subr.mxu0 0.0
    %881 = vmatpush2.msra.mxu0 0.0
    %882 = vmatprep.subr.mxu0 0.0
    %883 = vmatpush2.msra.mxu0 0.0
    %884 = vmatprep.mubr.f32.mxu0 0.0
    %885 = vmatmul.mubr.f32.gmra.mxu0 %v818
    %v886 = vpop.f32.mrf.mxu0
    %v887 = vadd.f32 %v794, %v886
    %v888 = vpop.f32.mrf.mxu0
    %889 = vdwg.mxu0
    %890 = vmax.xlane.f32.xlu0 %v887
    %v891 = vpop.xlane.xlu0 %890
    %v892 = vsub.f32 %v887, %v891
    %v893 = vmul.f32 %v892, 1.442695
    %v894 = vpow.pop %v893
    %895 = vadd.xlane.f32.xlu0 %v894
    %v896 = vpop.xlane.xlu0 %895
    %v897 = vlog2.pop %v896
    %v898 = vmul.f32 %v897, 0.6931472
    %v899 = vadd.f32 %v898, %v891
    %v900 = vsub.f32 %v887, %v899
    %901 = vst [vmem:[#allocation10] sm:$0xff] %v900
    // Predicated region
    $region42: #{tpu_custom_call.1} parent=1 // pred_check
      _
    $region43: #{tpu_custom_call.1} parent=1 // pred_check_branch
      %903 = sbr.rel (0) target = $region45
    $region44: #{tpu_custom_call.1} parent=1 // pred_region
      %s905 = ssub.s32 128, 128
      %906 = vsyncadd [#allocation4], %s905
      %s908 = sshll.u32 [#allocation10], 4
      %s909 = int_to_ptr.vmem [resolvable:$true] %s908
      %911 = dma.vmem_to_hbm [thread:$0]  %s909, 128, %s6, [#allocation4]
    $region45: #{tpu_custom_call.1} parent=1 // pred_fallthru
      _
    // Predicated region
    $region46: #{tpu_custom_call.1} parent=1 // pred_check
      _
    $region47: #{tpu_custom_call.1} parent=1 // pred_check_branch
      %913 = sbr.rel (0) target = $region49
    $region48: #{tpu_custom_call.1} parent=1 // pred_region
      %914 = dma.done [#allocation4], 128
    $region49: #{tpu_custom_call.1} parent=1 // pred_fallthru
      _
    %915 = vsyncpa [#allocation3], 1
    %916 = vsyncpa [#allocation6], 1
    %917 = vsyncpa [#allocation9], 1
    %918 = vsyncpa [#allocation4], 1

</llo_original>
